<compile_context>
chip_gen: v6e
topology: v6e:2x2x1
jax: 0.10.0
libtpu: 0.0.40
codegen_flags: <defaults>
</compile_context>

<pallas_src>
import jax
import jax.numpy as jnp
from jax.experimental import pallas as pl
from jax.experimental.pallas import tpu as pltpu


def _round_up(x, m):
    return ((x + m - 1) // m) * m


def prompt_layer_kernel(prefix_emb_ref, ctx_ref, suffix_emb_ref, prompts_ref):
    """Writes one label-tile of prompts: [prefix | broadcast(ctx) | suffix]."""
    tl = prompts_ref.shape[0]
    n_ctx = ctx_ref.shape[0]

    # Pass-through slabs: pure vld -> vst, no temporaries.
    prompts_ref[:, 0:1, :] = prefix_emb_ref[...]
    prompts_ref[:, 1 + n_ctx:, :] = suffix_emb_ref[...]

    # Broadcast ctx label-by-label.  A single (tl, n_ctx, D) broadcast store
    # would need tl*n_ctx*D/1024 vregs (>> 64 at production sizes) and spill;
    # this loop keeps only the ctx vregs live and reuses them for every label.
    ctx = ctx_ref[...]
    for l in range(tl):  # tl is static -> fully unrolled at trace time
        prompts_ref[l, 1:1 + n_ctx, :] = ctx
    # TODO(synk): seq offsets 1 and 1+n_ctx are not sublane(8)-aligned; padding
    # total_seq to a multiple of 8 (masks already carry validity) would remove
    # the masked boundary stores, but it changes the module's output shape, so
    # the exact PyTorch layout is preserved here.
    # TODO(synk): if the downstream encoder consumes bf16, emitting bf16 here
    # would ~halve HBM write bytes; kept f32 to match the module exactly.


def _pick_label_tile(n_labels, total_seq, suf_len, ctx_dim, vmem_budget_bytes):
    """Largest label tile whose double-buffered working set fits the budget."""
    seq_pad = _round_up(total_seq, 8)
    suf_pad = _round_up(max(suf_len, 1), 8)
    # 2x for BlockSpec double-buffering of the out / suffix / prefix blocks.
    per_label_bytes = 2 * (seq_pad + suf_pad + 8) * ctx_dim * 4
    tl = max(1, vmem_budget_bytes // per_label_bytes)
    if n_labels >= 2:
        # Keep >= 2 grid steps so "parallel" can split labels across v7x's
        # two TensorCores.
        tl = min(tl, pl.cdiv(n_labels, 2))
    return int(min(tl, n_labels))


def prompt_layer_forward(ctx, prefix_embs, suffix_embs, prefix_masks,
                         suffix_masks, *, label_tile=None,
                         vmem_budget_bytes=24 << 20, use_pallas=None):
    """Runs PromptLayer.forward() with a Pallas TPU kernel for the prompts.

    Args:
      ctx:          (n_ctx, ctx_dim)      float32  learned context vectors
      prefix_embs:  (n_labels, 1, D)      float32
      suffix_embs:  (n_labels, S-1, D)    float32
      prefix_masks: (n_labels, 1)         bool
      suffix_masks: (n_labels, S-1)       bool
    Returns:
      prompts: (n_labels, 1 + n_ctx + S-1, D) float32
      masks:   (n_labels, 1 + n_ctx + S-1)    float32
    """
    n_ctx, ctx_dim = ctx.shape
    n_labels = prefix_embs.shape[0]
    suf_len = suffix_embs.shape[1]
    total_seq = 1 + n_ctx + suf_len

    # Masks do not depend on ctx and their lane width is far below 128; keep
    # them out of the kernel.  torch.cat(bool, float) -> float32.
    masks = jnp.concatenate(
        [prefix_masks.astype(jnp.float32),
         jnp.ones((n_labels, n_ctx), jnp.float32),
         suffix_masks.astype(jnp.float32)], axis=1)

    out_bytes = n_labels * total_seq * ctx_dim * 4
    if use_pallas is None:
        # Tiny problems: fixed pallas_call overhead exceeds the copy itself.
        use_pallas = out_bytes >= (1 << 20)
    if not use_pallas:
        ctx_b = jnp.broadcast_to(ctx[None], (n_labels, n_ctx, ctx_dim))
        prompts = jnp.concatenate([prefix_embs, ctx_b, suffix_embs], axis=1)
        return prompts, masks

    if label_tile is None:
        tl = _pick_label_tile(n_labels, total_seq, suf_len, ctx_dim,
                              vmem_budget_bytes)
    else:
        tl = max(1, min(int(label_tile), n_labels))
    grid = (pl.cdiv(n_labels, tl),)

    # Explicit VMEM limit: v5e's scoped default is 16 MiB and v6e/v7x's 32 MiB;
    # the chosen tile may exceed those even though it fits physical VMEM.
    seq_pad = _round_up(total_seq, 8)
    suf_pad = _round_up(max(suf_len, 1), 8)
    working_set = (2 * tl * (seq_pad + suf_pad + 8) * ctx_dim * 4
                   + 2 * _round_up(n_ctx, 8) * ctx_dim * 4)
    vmem_limit = int(min(max(working_set + (2 << 20), 16 << 20), 40 << 20))

    read_bytes = int(prefix_embs.size + suffix_embs.size + ctx.size) * 4
    cost = pl.CostEstimate(flops=0, transcendentals=0,
                           bytes_accessed=int(read_bytes + out_bytes))

    prompts = pl.pallas_call(
        prompt_layer_kernel,
        out_shape=jax.ShapeDtypeStruct((n_labels, total_seq, ctx_dim),
                                       jnp.float32),
        grid=grid,
        in_specs=[
            # Per-label-tile blocks; last two dims are full extents, D is
            # lane-dense (multiple of 128).
            pl.BlockSpec((tl, 1, ctx_dim), lambda i: (i, 0, 0)),
            # ctx: same block every step -> loaded once, stays resident.
            pl.BlockSpec((n_ctx, ctx_dim), lambda i: (0, 0)),
            pl.BlockSpec((tl, suf_len, ctx_dim), lambda i: (i, 0, 0)),
        ],
        out_specs=pl.BlockSpec((tl, total_seq, ctx_dim), lambda i: (i, 0, 0)),
        compiler_params=pltpu.CompilerParams(
            dimension_semantics=("parallel",),
            vmem_limit_bytes=vmem_limit),
        cost_estimate=cost,
    )(prefix_embs, ctx, suffix_embs)

    return prompts, masks


def reference_forward(ctx, prefix_embs, suffix_embs, prefix_masks, suffix_masks):
    n_labels = prefix_embs.shape[0]
    n_ctx, ctx_dim = ctx.shape
    ctx_b = jnp.broadcast_to(ctx[None], (n_labels, n_ctx, ctx_dim))
    prompts = jnp.concatenate([prefix_embs, ctx_b, suffix_embs], axis=1)
    masks = jnp.concatenate(
        [prefix_masks.astype(jnp.float32),
         jnp.ones((n_labels, n_ctx), jnp.float32),
         suffix_masks.astype(jnp.float32)], axis=1)
    return prompts, masks


if __name__ == "__main__":
    # Small shapes consistent with the module:
    #   6 labels, n_ctx=10, ctx_dim=128 (small stand-in for 1024), seq_len_max=8.
    n_labels, n_ctx, ctx_dim, seq_len_max = 6, 10, 128, 8
    suf_len = seq_len_max - 1

    key = jax.random.PRNGKey(0)
    k_ctx, k_pre, k_suf = jax.random.split(key, 3)

    # ctx ~ N(0, 0.02) as in nn.init.normal_(ctx_vectors, std=0.02)
    ctx = 0.02 * jax.random.normal(k_ctx, (n_ctx, ctx_dim), dtype=jnp.float32)

    # Synthetic "encoder token embeddings" (deterministic, no checkpoint).
    prefix_embs = jax.random.normal(k_pre, (n_labels, 1, ctx_dim),
                                    dtype=jnp.float32)
    suffix_embs = jax.random.normal(k_suf, (n_labels, suf_len, ctx_dim),
                                    dtype=jnp.float32)

    # Prefix token (e.g. BOS) always present; suffix masks have ragged lengths.
    prefix_masks = jnp.ones((n_labels, 1), dtype=jnp.bool_)
    lengths = jnp.array([3, 5, 7, 2, 4, 6], dtype=jnp.int32)
    suffix_masks = (jnp.arange(suf_len)[None, :] < lengths[:, None])
    # Zero out embeddings past the mask, matching the torch.zeros padding buffers.
    suffix_embs = suffix_embs * suffix_masks[:, :, None].astype(jnp.float32)

    ref_prompts, ref_masks = reference_forward(ctx, prefix_embs, suffix_embs,
                                               prefix_masks, suffix_masks)

    # 1) Auto-tiled Pallas path: tl = cdiv(6, 2) = 3 -> grid=(2,), so the
    #    "parallel" label axis can split across v7x's two TensorCores.
    prompts, masks = prompt_layer_forward(ctx, prefix_embs, suffix_embs,
                                          prefix_masks, suffix_masks,
                                          use_pallas=True)
    prompts = jax.block_until_ready(prompts)
    masks = jax.block_until_ready(masks)

    assert prompts.shape == (n_labels, 1 + n_ctx + suf_len, ctx_dim)
    assert masks.shape == (n_labels, 1 + n_ctx + suf_len)
    assert prompts.dtype == jnp.float32 and masks.dtype == jnp.float32
    assert jnp.allclose(prompts, ref_prompts)
    assert jnp.allclose(masks, ref_masks)

    # 2) Ragged last label tile (n_labels % label_tile != 0): exercises partial
    #    block masking on both the padded reads and the output writeback.
    prompts_r, masks_r = prompt_layer_forward(ctx, prefix_embs, suffix_embs,
                                              prefix_masks, suffix_masks,
                                              label_tile=4, use_pallas=True)
    prompts_r = jax.block_until_ready(prompts_r)
    masks_r = jax.block_until_ready(masks_r)
    assert jnp.allclose(prompts_r, ref_prompts)
    assert jnp.allclose(masks_r, ref_masks)

    print("KERNEL_OK")
</pallas_src>

<mosaic_0001>
module attributes {stable_mosaic.version = 11 : i64} {
  func.func @prompt_layer_kernel(%arg0: i32, %arg1: memref<3x1x128xf32, #tpu.memory_space<vmem>>, %arg2: memref<10x128xf32, #tpu.memory_space<vmem>>, %arg3: memref<3x7x128xf32, #tpu.memory_space<vmem>>, %arg4: memref<3x18x128xf32, #tpu.memory_space<vmem>>) attributes {dimension_semantics = [#tpu.dimension_semantics<parallel>], iteration_bounds = array<i64: 2>, scalar_prefetch = 0 : i64, scratch_operands = 0 : i64, tpu.core_type = #tpu.core_type<tc>, window_params = [{transform_indices = @transform_0, window_bounds = array<i64: 3, 1, 128>}, {pipeline_mode = #tpu.pipeline_mode<synchronous>, transform_indices = @transform_1, window_bounds = array<i64: 10, 128>}, {transform_indices = @transform_2, window_bounds = array<i64: 3, 7, 128>}, {transform_indices = @transform_3, window_bounds = array<i64: 3, 18, 128>}]} {
    %c0 = arith.constant 0 : index
    %c0_0 = arith.constant 0 : index
    %c0_1 = arith.constant 0 : index
    %0 = vector.load %arg1[%c0, %c0_0, %c0_1] : memref<3x1x128xf32, #tpu.memory_space<vmem>>, vector<3x1x128xf32>
    %c0_2 = arith.constant 0 : index
    %c0_3 = arith.constant 0 : index
    %c0_4 = arith.constant 0 : index
    %1 = vector.load %arg4[%c0_2, %c0_3, %c0_4] : memref<3x18x128xf32, #tpu.memory_space<vmem>>, vector<3x1x128xf32>
    tpu.vector_store %arg4[%c0_2, %c0_3, %c0_4], %0 {strides = array<i32>} : memref<3x18x128xf32, #tpu.memory_space<vmem>>, vector<3x1x128xf32>,
    %c0_5 = arith.constant 0 : index
    %c0_6 = arith.constant 0 : index
    %c0_7 = arith.constant 0 : index
    %2 = vector.load %arg3[%c0_5, %c0_6, %c0_7] : memref<3x7x128xf32, #tpu.memory_space<vmem>>, vector<3x7x128xf32>
    %c0_8 = arith.constant 0 : index
    %c11 = arith.constant 11 : index
    %c0_9 = arith.constant 0 : index
    %3 = vector.load %arg4[%c0_8, %c11, %c0_9] : memref<3x18x128xf32, #tpu.memory_space<vmem>>, vector<3x7x128xf32>
    tpu.vector_store %arg4[%c0_8, %c11, %c0_9], %2 {strides = array<i32>} : memref<3x18x128xf32, #tpu.memory_space<vmem>>, vector<3x7x128xf32>,
    %c0_10 = arith.constant 0 : index
    %c0_11 = arith.constant 0 : index
    %4 = vector.load %arg2[%c0_10, %c0_11] : memref<10x128xf32, #tpu.memory_space<vmem>>, vector<10x128xf32>
    %c0_12 = arith.constant 0 : index
    %c1 = arith.constant 1 : index
    %c0_13 = arith.constant 0 : index
    %5 = vector.load %arg4[%c0_12, %c1, %c0_13] : memref<3x18x128xf32, #tpu.memory_space<vmem>>, vector<1x10x128xf32>
    %6 = vector.shape_cast %5 : vector<1x10x128xf32> to vector<10x128xf32>
    %7 = vector.shape_cast %4 : vector<10x128xf32> to vector<1x10x128xf32>
    tpu.vector_store %arg4[%c0_12, %c1, %c0_13], %7 {strides = array<i32>} : memref<3x18x128xf32, #tpu.memory_space<vmem>>, vector<1x10x128xf32>,
    %c1_14 = arith.constant 1 : index
    %c1_15 = arith.constant 1 : index
    %c0_16 = arith.constant 0 : index
    %8 = vector.load %arg4[%c1_14, %c1_15, %c0_16] : memref<3x18x128xf32, #tpu.memory_space<vmem>>, vector<1x10x128xf32>
    %9 = vector.shape_cast %8 : vector<1x10x128xf32> to vector<10x128xf32>
    %10 = vector.shape_cast %4 : vector<10x128xf32> to vector<1x10x128xf32>
    tpu.vector_store %arg4[%c1_14, %c1_15, %c0_16], %10 {strides = array<i32>} : memref<3x18x128xf32, #tpu.memory_space<vmem>>, vector<1x10x128xf32>,
    %c2 = arith.constant 2 : index
    %c1_17 = arith.constant 1 : index
    %c0_18 = arith.constant 0 : index
    %11 = vector.load %arg4[%c2, %c1_17, %c0_18] : memref<3x18x128xf32, #tpu.memory_space<vmem>>, vector<1x10x128xf32>
    %12 = vector.shape_cast %11 : vector<1x10x128xf32> to vector<10x128xf32>
    %13 = vector.shape_cast %4 : vector<10x128xf32> to vector<1x10x128xf32>
    tpu.vector_store %arg4[%c2, %c1_17, %c0_18], %13 {strides = array<i32>} : memref<3x18x128xf32, #tpu.memory_space<vmem>>, vector<1x10x128xf32>,
    return
  }
  func.func @transform_0(%arg0: i32) -> (i32, i32, i32) {
    %c0_i32 = arith.constant 0 : i32
    %c0_i32_0 = arith.constant 0 : i32
    %c0_i32_1 = arith.constant 0 : i32
    return %arg0, %c0_i32, %c0_i32_0 : i32, i32, i32
  }
  func.func @transform_1(%arg0: i32) -> (i32, i32) {
    %c0_i32 = arith.constant 0 : i32
    %c0_i32_0 = arith.constant 0 : i32
    %c0_i32_1 = arith.constant 0 : i32
    return %c0_i32, %c0_i32_0 : i32, i32
  }
  func.func @transform_2(%arg0: i32) -> (i32, i32, i32) {
    %c0_i32 = arith.constant 0 : i32
    %c0_i32_0 = arith.constant 0 : i32
    %c0_i32_1 = arith.constant 0 : i32
    return %arg0, %c0_i32, %c0_i32_0 : i32, i32, i32
  }
  func.func @transform_3(%arg0: i32) -> (i32, i32, i32) {
    %c0_i32 = arith.constant 0 : i32
    %c0_i32_0 = arith.constant 0 : i32
    %c0_i32_1 = arith.constant 0 : i32
    return %arg0, %c0_i32, %c0_i32_0 : i32, i32, i32
  }
}

</mosaic_0001>

<llo_original>
// kernel: tpu_custom_call.1
$region0: #{tpu_custom_call.1}
  #allocation0 [shape = 'u32[]', space=smem, size = 0x4, offset = 0x4, fixed_abs, tag = 'smem constant byte address 0x4 - core index']
  #allocation1 [shape = 'u32[144,128]{1,0:T(1,128)}', space=vmem, size = 0x12000, scoped, tag = 'internal scratch']
  %s0 = inlined_call_operand.hbm [shape: f32[6,1,128], index: 0, kind: input, shape index: {}]
  %s1 = inlined_call_operand.hbm [shape: f32[10,128], index: 1, kind: input, shape index: {}]
  %s2 = inlined_call_operand.hbm [shape: f32[6,7,128], index: 2, kind: input, shape index: {}]
  %s3 = inlined_call_operand.hbm [shape: f32[6,18,128], index: 3, kind: output, shape index: {}]
  %s4 = sld [smem:[#allocation0]]
  $region57: #{tpu_custom_call.1} parent=0
    _
  %s6 = ssub.s32 1, %s4
  %s7 = scalar_select 0, %s6, %s4
  $region1: #{tpu_custom_call.1} parent=0
    #allocation2 [shape = 'u8[3072]{0}', space=vmem, size = 0xc00, scoped, tag = 'input window, operand 0']
    #allocation3 [shape = 's32[2]{0}', space=sflag, size = 0x8, scoped, tag = 'scoped memory for tpu_custom_call.1']
    #allocation4 [shape = 's32[2]{0}', space=sflag, size = 0x8, scoped, tag = 'scoped memory for tpu_custom_call.1']
    #allocation5 [shape = 'u8[8192]{0}', space=vmem, size = 0x2000, scoped, tag = 'input window, operand 1, single buffered']
    #allocation6 [shape = 's32[1]{0}', space=sflag, size = 0x4, scoped, tag = 'scoped memory for tpu_custom_call.1']
    #allocation7 [shape = 'u8[24576]{0}', space=vmem, size = 0x6000, scoped, tag = 'input window, operand 2']
    #allocation8 [shape = 'u8[73728]{0}', space=vmem, size = 0x12000, scoped, tag = 'output window, operand 0']
    %8 = vsyncpa [#allocation3], 0
    %s9 = scalar_lea.sflag [#allocation3], 1
    %10 = vsyncpa %s9, 0
    %11 = vsyncpa [#allocation6], 0
    %12 = vsyncpa [#allocation4], 0
    %s13 = scalar_lea.sflag [#allocation4], 1
    %14 = vsyncpa %s13, 0
    loop: start=0, step=1, limit=4
    $region2: #{tpu_custom_call.1} parent=1 // loop_pre_header
      _
    $region3: #{tpu_custom_call.1} parent=1 // loop_header
      %s16 = sphi 0, %s20
      %p17 = scmp.ge.s32.totalorder %s16, 4
      %s26 = sphi 0, %s28
      %s29 = sphi 0, %s26
      %s30 = sphi 0, %s29
      %s46 = sphi 0, %s30
      %s50 = sphi 0, %s50
      %s52 = sphi 0, %s50
      %s53 = sphi 0, %s52
      %s67 = sphi 0, %s53
      %s73 = sphi 0, %s75
      %s76 = sphi 0, %s73
      %s77 = sphi 0, %s76
      %s93 = sphi 0, %s77
      %s99 = sphi 0, %s101
      %s102 = sphi 0, %s99
      %s103 = sphi 0, %s102
      %s119 = sphi 0, %s103
    $region4: #{tpu_custom_call.1} parent=1 // loop_header_branch
      %19 = sbr.rel (%p17) target = $region8
    $region5: #{tpu_custom_call.1} parent=1 // loop_body
      %s21 = ssub.s32 %s16, 1
      %s22 = ssub.s32 %s16, 2
      %s23 = sadd.s32 %s16, 1
      %s24 = ssub.s32 %s16, %s23
      %p25 = scmp.eq.s32.totalorder %s24, 0
      %s27 = sadd.s32 %s26, 1
      %s28 = scalar_select %p25, %s26, %s27
      %p31 = pneg %p25
      %p32 = scmp.eq.s32.totalorder %s16, 1
      %p33 = por %p31, %p32
      %p34 = scmp.ne.s32.totalorder %s26, %s29
      %p35 = scmp.eq.s32.totalorder %s16, 0
      %p36 = por %p34, %p35
      %p37 = scmp.ne.s32.totalorder %s26, %s29
      %p38 = scmp.eq.s32.totalorder %s21, 1
      %p39 = por %p37, %p38
      %p40 = scmp.ne.s32.totalorder %s29, %s30
      %p41 = scmp.eq.s32.totalorder %s21, 0
      %p42 = por %p40, %p41
      %p43 = scmp.ne.s32.totalorder %s29, %s30
      %p44 = scmp.eq.s32.totalorder %s22, 1
      %p45 = por %p43, %p44
      %p47 = scmp.ne.s32.totalorder %s30, %s46
      %p48 = scmp.eq.s32.totalorder %s22, 0
      %p49 = por %p47, %p48
      %s51 = sadd.s32 %s50, 1
      %p54 = scmp.eq.s32.totalorder %s16, 1
      %p55 = scmp.ne.s32.totalorder %s50, %s52
      %p56 = scmp.eq.s32.totalorder %s16, 0
      %p57 = por %p55, %p56
      %p58 = scmp.ne.s32.totalorder %s50, %s52
      %p59 = scmp.eq.s32.totalorder %s21, 1
      %p60 = por %p58, %p59
      %p61 = scmp.ne.s32.totalorder %s52, %s53
      %p62 = scmp.eq.s32.totalorder %s21, 0
      %p63 = por %p61, %p62
      %p64 = scmp.ne.s32.totalorder %s52, %s53
      %p65 = scmp.eq.s32.totalorder %s22, 1
      %p66 = por %p64, %p65
      %p68 = scmp.ne.s32.totalorder %s53, %s67
      %p69 = scmp.eq.s32.totalorder %s22, 0
      %p70 = por %p68, %p69
      %s71 = ssub.s32 %s16, %s23
      %p72 = scmp.eq.s32.totalorder %s71, 0
      %s74 = sadd.s32 %s73, 1
      %s75 = scalar_select %p72, %s73, %s74
      %p78 = pneg %p72
      %p79 = scmp.eq.s32.totalorder %s16, 1
      %p80 = por %p78, %p79
      %p81 = scmp.ne.s32.totalorder %s73, %s76
      %p82 = scmp.eq.s32.totalorder %s16, 0
      %p83 = por %p81, %p82
      %p84 = scmp.ne.s32.totalorder %s73, %s76
      %p85 = scmp.eq.s32.totalorder %s21, 1
      %p86 = por %p84, %p85
      %p87 = scmp.ne.s32.totalorder %s76, %s77
      %p88 = scmp.eq.s32.totalorder %s21, 0
      %p89 = por %p87, %p88
      %p90 = scmp.ne.s32.totalorder %s76, %s77
      %p91 = scmp.eq.s32.totalorder %s22, 1
      %p92 = por %p90, %p91
      %p94 = scmp.ne.s32.totalorder %s77, %s93
      %p95 = scmp.eq.s32.totalorder %s22, 0
      %p96 = por %p94, %p95
      %s97 = ssub.s32 %s16, %s23
      %p98 = scmp.eq.s32.totalorder %s97, 0
      %s100 = sadd.s32 %s99, 1
      %s101 = scalar_select %p98, %s99, %s100
      %p104 = pneg %p98
      %p105 = scmp.eq.s32.totalorder %s16, 1
      %p106 = por %p104, %p105
      %p107 = scmp.ne.s32.totalorder %s99, %s102
      %p108 = scmp.eq.s32.totalorder %s16, 0
      %p109 = por %p107, %p108
      %p110 = scmp.ne.s32.totalorder %s99, %s102
      %p111 = scmp.eq.s32.totalorder %s21, 1
      %p112 = por %p110, %p111
      %p113 = scmp.ne.s32.totalorder %s102, %s103
      %p114 = scmp.eq.s32.totalorder %s21, 0
      %p115 = por %p113, %p114
      %p116 = scmp.ne.s32.totalorder %s102, %s103
      %p117 = scmp.eq.s32.totalorder %s22, 1
      %p118 = por %p116, %p117
      %p120 = scmp.ne.s32.totalorder %s103, %s119
      %p121 = scmp.eq.s32.totalorder %s22, 0
      %p122 = por %p120, %p121
      %p123 = scmp.le.s32.totalorder 1, %s16
      %p124 = scmp.lt.s32.totalorder %s16, 3
      %p125 = pnand %p123, %p124
      %p126 = pneg %p125
      // Predicated region
      $region9: #{tpu_custom_call.1} parent=5 // pred_check
        _
      $region10: #{tpu_custom_call.1} parent=5 // pred_check_branch
        %128 = sbr.rel (%p125) target = $region12
      $region11: #{tpu_custom_call.1} parent=5 // pred_region
        %s129 = ssub.s32 %s16, 1
        // Predicated region
        $region13: #{tpu_custom_call.1} parent=11 // pred_check
          %p130 = pneg %p63
        $region14: #{tpu_custom_call.1} parent=11 // pred_check_branch
          %132 = sbr.rel (%p130) target = $region16
        $region15: #{tpu_custom_call.1} parent=11 // pred_region
          %s134 = ssub.s32 256, 256
          %135 = vsyncadd [#allocation6], %s134
          %s136 = sshll.u32 [#allocation5], 4
          %s137 = int_to_ptr.vmem [resolvable:$true] %s136
          %142 = dma.hbm_to_vmem [thread:$0]  %s1, 256, %s137, [#allocation6], 128, 128, 8
        $region16: #{tpu_custom_call.1} parent=11 // pred_fallthru
          _
      $region12: #{tpu_custom_call.1} parent=5 // pred_fallthru
        _
      %p143 = scmp.lt.s32.totalorder %s16, 2
      // Predicated region
      $region17: #{tpu_custom_call.1} parent=5 // pred_check
        %p144 = pneg %p143
      $region18: #{tpu_custom_call.1} parent=5 // pred_check_branch
        %146 = sbr.rel (%p144) target = $region20
      $region19: #{tpu_custom_call.1} parent=5 // pred_region
        // Predicated region
        $region21: #{tpu_custom_call.1} parent=19 // pred_check
          %p147 = pneg %p36
        $region22: #{tpu_custom_call.1} parent=19 // pred_check_branch
          %149 = sbr.rel (%p147) target = $region24
        $region23: #{tpu_custom_call.1} parent=19 // pred_region
          %s150 = sand.u32 %s16, 1
          %s151 = scalar_lea.sflag [#allocation3], %s150
          %s152 = sand.u32 %s26, 1
          %s153 = smul.addr %s152, 3
          %s154 = scalar_lea.vmem [#allocation2], %s153
          %s155 = smul.u32 3, %s16
          %s157 = ssub.s32 48, 48
          %158 = vsyncadd %s151, %s157
          %s159 = smul.addr %s155, 16
          %s160 = scalar_lea.hbm %s0, %s159
          %s161 = sshll.u32 %s154, 4
          %s162 = int_to_ptr.vmem [resolvable:$true] %s161
          %167 = dma.hbm_to_vmem [thread:$0]  %s160, 48, %s162, %s151, 16, 16, 1
        $region24: #{tpu_custom_call.1} parent=19 // pred_fallthru
          _
        // Predicated region
        $region25: #{tpu_custom_call.1} parent=19 // pred_check
          %p168 = pneg %p83
        $region26: #{tpu_custom_call.1} parent=19 // pred_check_branch
          %170 = sbr.rel (%p168) target = $region28
        $region27: #{tpu_custom_call.1} parent=19 // pred_region
          %s171 = sand.u32 %s16, 1
          %s172 = scalar_lea.sflag [#allocation3], %s171
          %s173 = sand.u32 %s73, 1
          %s174 = smul.addr %s173, 24
          %s175 = scalar_lea.vmem [#allocation7], %s174
          %s176 = smul.u32 3, %s16
          %s178 = ssub.s32 384, 384
          %179 = vsyncadd %s172, %s178
          %s180 = smul.addr %s176, 128
          %s181 = scalar_lea.hbm %s2, %s180
          %s182 = sshll.u32 %s175, 4
          %s183 = int_to_ptr.vmem [resolvable:$true] %s182
          %188 = dma.hbm_to_vmem [thread:$0]  %s181, 384, %s183, %s172, 128, 128, 8
        $region28: #{tpu_custom_call.1} parent=19 // pred_fallthru
          _
      $region20: #{tpu_custom_call.1} parent=5 // pred_fallthru
        _
      %p189 = scmp.le.s32.totalorder 1, %s16
      %p190 = scmp.lt.s32.totalorder %s16, 3
      %p191 = pnand %p189, %p190
      %p192 = pneg %p191
      // Predicated region
      $region29: #{tpu_custom_call.1} parent=5 // pred_check
        _
      $region30: #{tpu_custom_call.1} parent=5 // pred_check_branch
        %194 = sbr.rel (%p191) target = $region32
      $region31: #{tpu_custom_call.1} parent=5 // pred_region
        %s195 = ssub.s32 %s16, 1
        %s196 = sand.u32 %s21, 1
        %s197 = scalar_lea.sflag [#allocation3], %s196
        %s198 = sand.u32 %s29, 1
        %s199 = smul.addr %s198, 3
        %s200 = scalar_lea.vmem [#allocation2], %s199
        // Predicated region
        $region33: #{tpu_custom_call.1} parent=31 // pred_check
          %p201 = pneg %p42
        $region34: #{tpu_custom_call.1} parent=31 // pred_check_branch
          %203 = sbr.rel (%p201) target = $region36
        $region35: #{tpu_custom_call.1} parent=31 // pred_region
          %204 = dma.done %s197, 48
        $region36: #{tpu_custom_call.1} parent=31 // pred_fallthru
          _
        // Predicated region
        $region37: #{tpu_custom_call.1} parent=31 // pred_check
          %p205 = pneg %p63
        $region38: #{tpu_custom_call.1} parent=31 // pred_check_branch
          %207 = sbr.rel (%p205) target = $region40
        $region39: #{tpu_custom_call.1} parent=31 // pred_region
          %208 = dma.done [#allocation6], 256
        $region40: #{tpu_custom_call.1} parent=31 // pred_fallthru
          _
        %s209 = sand.u32 %s21, 1
        %s210 = scalar_lea.sflag [#allocation3], %s209
        %s211 = sand.u32 %s76, 1
        %s212 = smul.addr %s211, 24
        %s213 = scalar_lea.vmem [#allocation7], %s212
        // Predicated region
        $region41: #{tpu_custom_call.1} parent=31 // pred_check
          %p214 = pneg %p89
        $region42: #{tpu_custom_call.1} parent=31 // pred_check_branch
          %216 = sbr.rel (%p214) target = $region44
        $region43: #{tpu_custom_call.1} parent=31 // pred_region
          %217 = dma.done %s210, 384
        $region44: #{tpu_custom_call.1} parent=31 // pred_fallthru
          _
        %s218 = sand.u32 %s21, 1
        %s219 = scalar_lea.sflag [#allocation3], %s218
        %s220 = sand.u32 %s29, 1
        %s221 = smul.addr %s220, 3
        %s222 = scalar_lea.vmem [#allocation2], %s221
        %p223 = pneg %p42
        %p224 = pneg %p39
        %p225 = pneg %p63
        %p226 = pneg %p60
        %s227 = sand.u32 %s21, 1
        %s228 = scalar_lea.sflag [#allocation3], %s227
        %s229 = sand.u32 %s76, 1
        %s230 = smul.addr %s229, 24
        %s231 = scalar_lea.vmem [#allocation7], %s230
        %p232 = pneg %p89
        %p233 = pneg %p86
        %p234 = pneg %p115
        %p235 = pneg %p112
        %s236 = sand.u32 %s102, 1
        %s237 = scalar_lea.sflag [#allocation4], %s236
        %s238 = sand.u32 %s102, 1
        %s239 = smul.addr %s238, 72
        %s240 = scalar_lea.vmem [#allocation8], %s239
        %s241 = smul.u32 3, %s21
        %s242 = smul.u32 3, %s21
        %s243 = smul.u32 3, %s21
        %v244 = vld [vmem:[%s200] sm:$0x1]
        %v245 = vld [vmem:[%s200 + $0x1] sm:$0x1]
        %v246 = vld [vmem:[%s200 + $0x2] sm:$0x1]
        %247 = vst [vmem:[%s240] sm:$0x1] %v244
        %248 = vst [vmem:[%s240 + $0x18] sm:$0x1] %v245
        %249 = vst [vmem:[%s240 + $0x30] sm:$0x1] %v246
        %v250 = vld [vmem:[%s213] sm:$0x7f]
        %v251 = vld [vmem:[%s213 + $0x8] sm:$0x7f]
        %v252 = vld [vmem:[%s213 + $0x10] sm:$0x7f]
        %253 = vst [vmem:[%s240 + $0xb] sm:$0x7f] %v250
        %254 = vst [vmem:[%s240 + $0x23] sm:$0x7f] %v251
        %255 = vst [vmem:[%s240 + $0x3b] sm:$0x7f] %v252
        %v256 = vld [vmem:[#allocation5] sm:$0xff]
        %v257 = vld [vmem:[#allocation5 + $0x8] sm:$0x3]
        %258 = vst [vmem:[%s240 + $0x1] sm:$0xff] %v256
        %259 = vst [vmem:[%s240 + $0x9] sm:$0x3] %v257
        %s260 = scalar_lea.vmem %s240, 24 [#allocation8]
        %261 = vst [vmem:[%s260 + $0x1] sm:$0xff] %v256
        %262 = vst [vmem:[%s260 + $0x9] sm:$0x3] %v257
        %s263 = scalar_lea.vmem %s240, 48 [#allocation8]
        %264 = vst [vmem:[%s263 + $0x1] sm:$0xff] %v256
        %265 = vst [vmem:[%s263 + $0x9] sm:$0x3] %v257
        %s266 = sand.u32 %s102, 1
        %s267 = scalar_lea.sflag [#allocation4], %s266
        %s268 = sand.u32 %s102, 1
        %s269 = smul.addr %s268, 72
        %s270 = scalar_lea.vmem [#allocation8], %s269
        // Predicated region
        $region45: #{tpu_custom_call.1} parent=31 // pred_check
          %p271 = pneg %p112
        $region46: #{tpu_custom_call.1} parent=31 // pred_check_branch
          %273 = sbr.rel (%p271) target = $region48
        $region47: #{tpu_custom_call.1} parent=31 // pred_region
          %s274 = smul.u32 3, %s21
          %s276 = ssub.s32 1152, 1152
          %277 = vsyncadd %s267, %s276
          %s278 = smul.addr %s274, 3
          %s279 = smul.addr %s278, 128
          %s280 = scalar_lea.hbm %s3, %s279
          %s281 = sshll.u32 %s270, 4
          %s282 = int_to_ptr.vmem [resolvable:$true] %s281
          %287 = dma.vmem_to_hbm [thread:$0]  %s282, 1152, %s280, %s267, 128, 128, 8
        $region48: #{tpu_custom_call.1} parent=31 // pred_fallthru
          _
      $region32: #{tpu_custom_call.1} parent=5 // pred_fallthru
        _
      %p288 = scmp.le.s32.totalorder 2, %s16
      // Predicated region
      $region49: #{tpu_custom_call.1} parent=5 // pred_check
        %p289 = pneg %p288
      $region50: #{tpu_custom_call.1} parent=5 // pred_check_branch
        %291 = sbr.rel (%p289) target = $region52
      $region51: #{tpu_custom_call.1} parent=5 // pred_region
        %s292 = ssub.s32 %s16, 2
        // Predicated region
        $region53: #{tpu_custom_call.1} parent=51 // pred_check
          %p293 = pneg %p118
        $region54: #{tpu_custom_call.1} parent=51 // pred_check_branch
          %295 = sbr.rel (%p293) target = $region56
        $region55: #{tpu_custom_call.1} parent=51 // pred_region
          %s296 = sand.u32 %s103, 1
          %s297 = scalar_lea.sflag [#allocation4], %s296
          %s298 = sand.u32 %s103, 1
          %s299 = smul.addr %s298, 72
          %s300 = scalar_lea.vmem [#allocation8], %s299
          %301 = dma.done %s297, 1152
        $region56: #{tpu_custom_call.1} parent=51 // pred_fallthru
          _
      $region52: #{tpu_custom_call.1} parent=5 // pred_fallthru
        _
    $region6: #{tpu_custom_call.1} parent=1 // loop_footer
      %s20 = sadd.s32 1, %s16
    $region7: #{tpu_custom_call.1} parent=1 // loop_footer_branch
      %15 = sbr.rel target = $region3
    $region8: #{tpu_custom_call.1} parent=1 // loop_exit
      _
    %302 = vsyncpa [#allocation3], 1
    %s303 = scalar_lea.sflag [#allocation3], 1
    %304 = vsyncpa %s303, 1
    %305 = vsyncpa [#allocation6], 1
    %306 = vsyncpa [#allocation4], 1
    %s307 = scalar_lea.sflag [#allocation4], 1
    %308 = vsyncpa %s307, 1

</llo_original>
